<compile_context>
chip_gen: v6e
topology: v6e:2x2x1
jax: 0.10.0
libtpu: 0.0.40
codegen_flags: <defaults>
</compile_context>

<pallas_src>
import functools

import jax
import jax.numpy as jnp
from jax.experimental import pallas as pl
from jax.experimental.pallas import tpu as pltpu


def _round_up(x, m):
    return ((x + m - 1) // m) * m


def _map_to_amount_kernel(x_ref, w_ref, b_ref, o_ref):
    # x_ref: (F, tb) feature-major maps tile (VMEM), f32 or bf16
    # w_ref: (F, 1)  resident Linear weight column (VMEM, DMA'd once)
    # b_ref: (1,)    bias scalar (SMEM)
    # o_ref: (1, tb) lane-dense per-map amounts
    x = x_ref[...].astype(jnp.float32)   # no-op for f32; cheap VPU upcast for bf16 streams
    w = w_ref[...]                       # (F, 1) f32, lane-broadcast against x
    # VPU multiply + sublane reduce: ceil(F/8)-1 vector adds + one sublane
    # reduce per 128 outputs.  Deliberately no cross-lane XLU reduce, no MXU.
    acc = jnp.sum(x * w, axis=0, keepdims=True)   # (1, tb)
    o_ref[...] = acc + b_ref[0]


@functools.partial(jax.jit, static_argnames=("block_cols",))
def map_to_amount_feature_major(maps_fm, weight, bias, *, block_cols=8192):
    """Hot path. maps_fm: (n_features, B) feature-major, f32 or bf16. Returns (B,) f32."""
    F, B = maps_fm.shape
    if maps_fm.dtype not in (jnp.float32, jnp.bfloat16):
        maps_fm = maps_fm.astype(jnp.float32)
    w = jnp.asarray(weight, jnp.float32).reshape(F, 1)
    b = jnp.asarray(bias, jnp.float32).reshape(1)

    # Batch tile: multiple of 128 lanes, or the full batch if smaller (the
    # full-array-dim exemption makes a non-multiple legal in that case).
    # F * tb * 4 B per input buffer (~800 KiB at defaults), double-buffered ->
    # well under v7x's 32 MiB scoped-VMEM default.
    if B >= block_cols:
        tb = _round_up(block_cols, 128)
    else:
        tb = B

    grid = (pl.cdiv(B, tb),)   # ragged tail handled by boundary-block clipping

    out = pl.pallas_call(
        _map_to_amount_kernel,
        out_shape=jax.ShapeDtypeStruct((1, B), jnp.float32),
        grid=grid,
        in_specs=[
            pl.BlockSpec((F, tb), lambda i: (0, i)),             # maps tile, unpadded F
            pl.BlockSpec((F, 1), lambda i: (0, 0)),              # resident weight column
            pl.BlockSpec(memory_space=pltpu.MemorySpace.SMEM),   # bias scalar
        ],
        out_specs=pl.BlockSpec((1, tb), lambda i: (0, i)),       # lane-dense output row
        compiler_params=pltpu.CompilerParams(
            # TODO(synk): verify in a trace that the batch axis actually shards
            # across v7x's two TensorCores; plain "parallel" has little codegen
            # effect -- switch to pltpu.CORE_PARALLEL / a core_map split if not.
            dimension_semantics=("parallel",),
        ),
    )(maps_fm, w, b)
    return out[0]


def map_to_amount_batched(maps, weight, bias, *, block_cols=8192):
    """maps: (B, ...) with n_features trailing elements per map. Returns (B,) f32.

    Pays one bandwidth-bound transpose pass to reach the kernel's feature-major
    layout; use map_to_amount_feature_major() directly if (n_features, B) data
    can be produced upstream (zero extra HBM passes).
    """
    B = maps.shape[0]
    maps_fm = maps.reshape(B, -1).T          # (F, B): the only extra HBM pass
    return map_to_amount_feature_major(maps_fm, weight, bias, block_cols=block_cols)


def map_to_amount(mapa, weight, bias):
    """Module-equivalent forward: Linear(n_features, 1)(mapa.view(n_features)) -> (1,).

    A single 25-element map is pure launch overhead for any kernel; prefer the
    batched / feature-major entry points in an inference loop.
    """
    out = map_to_amount_feature_major(mapa.reshape(-1, 1), weight, bias)
    return out.reshape(1)


def _init_params(key, n_features):
    # Deterministic synthetic init mimicking nn.Linear's U(-1/sqrt(f), 1/sqrt(f)).
    kw, kb = jax.random.split(key)
    bound = float(n_features) ** -0.5
    weight = jax.random.uniform(kw, (1, n_features), jnp.float32, -bound, bound)
    bias = jax.random.uniform(kb, (1,), jnp.float32, -bound, bound)
    return weight, bias


if __name__ == "__main__":
    kernel_radius = 3                       # small but non-trivial
    side = 2 * kernel_radius - 1            # 5
    n_features = side * side                # 25

    key = jax.random.PRNGKey(0)
    k_map, k_batch, k_params = jax.random.split(key, 3)
    weight, bias = _init_params(k_params, n_features)
    w_row = weight.reshape(1, n_features)

    # --- Module-equivalent single-map forward (shape (1,)) -------------------
    mapa = jax.random.normal(k_map, (side, side), jnp.float32)
    out_single = jax.block_until_ready(map_to_amount(mapa, weight, bias))
    ref_single = jnp.sum(mapa.reshape(-1) * w_row[0]) + bias[0]
    assert out_single.shape == (1,)
    assert jnp.allclose(out_single[0], ref_single, atol=1e-5, rtol=1e-5)

    # --- Batched, natural (B, ...) layout; ragged B + multi-step grid --------
    B = 1000                                # not a multiple of 128: exercises tail clipping
    maps = jax.random.normal(k_batch, (B, side, side), jnp.float32)
    out_batch = jax.block_until_ready(
        map_to_amount_batched(maps, weight, bias, block_cols=256))
    ref_batch = jnp.sum(maps.reshape(B, -1) * w_row, axis=1) + bias[0]
    assert out_batch.shape == (B,)
    assert jnp.allclose(out_batch, ref_batch, atol=1e-5, rtol=1e-5)

    # --- Zero-extra-pass feature-major hot path, bf16 streaming (v5e) --------
    maps_fm_bf16 = maps.reshape(B, -1).T.astype(jnp.bfloat16)
    out_bf16 = jax.block_until_ready(
        map_to_amount_feature_major(maps_fm_bf16, weight, bias, block_cols=256))
    # Reference uses the same bf16-rounded inputs (bf16 quantization happens
    # before the f32 accumulate in the kernel as well).
    ref_bf16 = jnp.sum(maps_fm_bf16.astype(jnp.float32) * w_row.reshape(-1, 1),
                       axis=0) + bias[0]
    assert out_bf16.shape == (B,)
    assert jnp.allclose(out_bf16, ref_bf16, atol=1e-5, rtol=1e-5)

    print("KERNEL_OK")
</pallas_src>

<mosaic_0001>
module attributes {stable_mosaic.version = 11 : i64} {
  func.func @_map_to_amount_kernel(%arg0: i32, %arg1: memref<25x1xf32, #tpu.memory_space<vmem>>, %arg2: memref<25x1xf32, #tpu.memory_space<vmem>>, %arg3: memref<1xf32, #tpu.memory_space<smem>>, %arg4: memref<1x1xf32, #tpu.memory_space<vmem>>) attributes {dimension_semantics = [#tpu.dimension_semantics<parallel>], iteration_bounds = array<i64: 1>, scalar_prefetch = 0 : i64, scratch_operands = 0 : i64, tpu.core_type = #tpu.core_type<tc>, window_params = [{transform_indices = @transform_0, window_bounds = array<i64: 25, 1>}, {pipeline_mode = #tpu.pipeline_mode<synchronous>, transform_indices = @transform_1, window_bounds = array<i64: 25, 1>}, {transform_indices = @transform_2, window_bounds = array<i64: 1>}, {transform_indices = @transform_3, window_bounds = array<i64: 1, 1>}]} {
    %c0 = arith.constant 0 : index
    %c0_0 = arith.constant 0 : index
    %0 = vector.load %arg1[%c0, %c0_0] : memref<25x1xf32, #tpu.memory_space<vmem>>, vector<25x1xf32>
    %c0_1 = arith.constant 0 : index
    %c0_2 = arith.constant 0 : index
    %1 = vector.load %arg2[%c0_1, %c0_2] : memref<25x1xf32, #tpu.memory_space<vmem>>, vector<25x1xf32>
    %2 = arith.mulf %0, %1 : vector<25x1xf32>
    %cst = arith.constant dense<0.000000e+00> : vector<1xf32>
    %3 = vector.multi_reduction <add>, %2, %cst [0] : vector<25x1xf32> to vector<1xf32>
    %4 = vector.shape_cast %3 : vector<1xf32> to vector<1x1xf32>
    %c0_3 = arith.constant 0 : index
    %5 = memref.load %arg3[%c0_3] : memref<1xf32, #tpu.memory_space<smem>>
    %6 = vector.broadcast %5 : f32 to vector<1x1xf32>
    %7 = arith.addf %4, %6 : vector<1x1xf32>
    %c0_4 = arith.constant 0 : index
    %c0_5 = arith.constant 0 : index
    %8 = vector.load %arg4[%c0_4, %c0_5] : memref<1x1xf32, #tpu.memory_space<vmem>>, vector<1x1xf32>
    tpu.vector_store %arg4[%c0_4, %c0_5], %7 {strides = array<i32>} : memref<1x1xf32, #tpu.memory_space<vmem>>, vector<1x1xf32>,
    return
  }
  func.func @transform_0(%arg0: i32) -> (i32, i32) {
    %c0_i32 = arith.constant 0 : i32
    %c0_i32_0 = arith.constant 0 : i32
    return %c0_i32, %arg0 : i32, i32
  }
  func.func @transform_1(%arg0: i32) -> (i32, i32) {
    %c0_i32 = arith.constant 0 : i32
    %c0_i32_0 = arith.constant 0 : i32
    %c0_i32_1 = arith.constant 0 : i32
    return %c0_i32, %c0_i32_0 : i32, i32
  }
  func.func @transform_2(%arg0: i32) -> i32 {
    %c0_i32 = arith.constant 0 : i32
    %c0_i32_0 = arith.constant 0 : i32
    return %c0_i32 : i32
  }
  func.func @transform_3(%arg0: i32) -> (i32, i32) {
    %c0_i32 = arith.constant 0 : i32
    %c0_i32_0 = arith.constant 0 : i32
    return %c0_i32, %arg0 : i32, i32
  }
}

</mosaic_0001>

<llo_original>
// kernel: map_to_amount_feature_major.1
$region0: #{map_to_amount_feature_major.1}
  #allocation0 [shape = 'u32[]', space=smem, size = 0x4, offset = 0x4, fixed_abs, tag = 'smem constant byte address 0x4 - core index']
  #allocation1 [shape = 'u32[144,128]{1,0:T(1,128)}', space=vmem, size = 0x12000, scoped, tag = 'internal scratch']
  #allocation2 [shape = 'f32[1]{0:T(128)S(6)}', space=smem, size = 0x200, scoped, tag = 'scoped memory for map_to_amount_feature_major.1']
  %s0 = inlined_call_operand.vmem [shape: f32[25,1], index: 0, kind: input, shape index: {}]
  %s1 = inlined_call_operand.vmem [shape: f32[25,1], index: 1, kind: input, shape index: {}]
  %s2 = inlined_call_operand.<no memory space> [shape: f32[1], index: 2, kind: input, shape index: {}]
  %s3 = inlined_call_operand.hbm [shape: f32[1,1], index: 3, kind: output, shape index: {}]
  %s4 = sld [smem:[#allocation0]]
  $region22: #{map_to_amount_feature_major.1} parent=0
    _
  %s6 = ssub.s32 1, %s4
  %s7 = scalar_select 0, %s6, %s4
  %8 = sst [smem:[#allocation2]] %s2
  $region1: #{map_to_amount_feature_major.1} parent=0
    #allocation3 [shape = 'u8[512]{0}', space=vmem, size = 0x400, scoped, tag = 'output window, operand 0, single buffered']
    #allocation4 [shape = 's32[1]{0}', space=sflag, size = 0x4, scoped, tag = 'scoped memory for map_to_amount_feature_major.1']
    %9 = vsyncpa [#allocation4], 0
    // Predicated region
    $region2: #{map_to_amount_feature_major.1} parent=1 // pred_check
      _
    $region3: #{map_to_amount_feature_major.1} parent=1 // pred_check_branch
      %11 = sbr.rel (0) target = $region5
    $region4: #{map_to_amount_feature_major.1} parent=1 // pred_region
      _
    $region5: #{map_to_amount_feature_major.1} parent=1 // pred_fallthru
      _
    // Predicated region
    $region6: #{map_to_amount_feature_major.1} parent=1 // pred_check
      _
    $region7: #{map_to_amount_feature_major.1} parent=1 // pred_check_branch
      %13 = sbr.rel (0) target = $region9
    $region8: #{map_to_amount_feature_major.1} parent=1 // pred_region
      _
    $region9: #{map_to_amount_feature_major.1} parent=1 // pred_fallthru
      _
    // Predicated region
    $region10: #{map_to_amount_feature_major.1} parent=1 // pred_check
      _
    $region11: #{map_to_amount_feature_major.1} parent=1 // pred_check_branch
      %15 = sbr.rel (0) target = $region13
    $region12: #{map_to_amount_feature_major.1} parent=1 // pred_region
      _
    $region13: #{map_to_amount_feature_major.1} parent=1 // pred_fallthru
      _
    %v16 = vld [vmem:[%s0] sm:$0xff]
    %v17 = vld [vmem:[%s0 + $0x8] sm:$0xff]
    %v18 = vld [vmem:[%s0 + $0x10] sm:$0xff]
    %v19 = vld [vmem:[%s0 + $0x18] sm:$0x1]
    %v20 = vld [vmem:[%s1] sm:$0xff]
    %v21 = vld [vmem:[%s1 + $0x8] sm:$0xff]
    %v22 = vld [vmem:[%s1 + $0x10] sm:$0xff]
    %v23 = vld [vmem:[%s1 + $0x18] sm:$0x1]
    %v24 = vmul.f32 %v16, %v20
    %v25 = vmul.f32 %v17, %v21
    %v26 = vmul.f32 %v18, %v22
    %v27 = vmul.f32 %v19, %v23
    %vm28 = vcmask 7168
    %v29 = vsel %vm28, %v24, 0.0
    %v30 = vsel %vm28, %v25, 0.0
    %v31 = vadd.f32 %v29, %v30
    %v32 = vsel %vm28, %v26, 0.0
    %v33 = vadd.f32 %v31, %v32
    %vm34 = vcmask 0
    %v35 = vsel %vm34, %v27, 0.0
    %v36 = vadd.f32 %v33, %v35
    %v37 = vrot.slane %v36, 4
    %v38 = vadd.f32 %v36, %v37
    %v39 = vrot.slane %v38, 2
    %v40 = vadd.f32 %v38, %v39
    %v41 = vrot.slane %v40, 1
    %v42 = vadd.f32 %v40, %v41
    %s43 = sld [smem:[#allocation2]]
    %v44 = vstv %s43
    %v45 = vadd.f32 %v42, %v44
    %46 = vst.msk [vmem:[#allocation3] sm:$0x1] %vm34, %v45
    // Predicated region
    $region14: #{map_to_amount_feature_major.1} parent=1 // pred_check
      _
    $region15: #{map_to_amount_feature_major.1} parent=1 // pred_check_branch
      %48 = sbr.rel (0) target = $region17
    $region16: #{map_to_amount_feature_major.1} parent=1 // pred_region
      %s50 = ssub.s32 16, 16
      %51 = vsyncadd [#allocation4], %s50
      %s53 = sshll.u32 [#allocation3], 4
      %s54 = int_to_ptr.vmem [resolvable:$true] %s53
      %56 = dma.vmem_to_hbm [thread:$0]  %s54, 16, %s3, [#allocation4]
    $region17: #{map_to_amount_feature_major.1} parent=1 // pred_fallthru
      _
    // Predicated region
    $region18: #{map_to_amount_feature_major.1} parent=1 // pred_check
      _
    $region19: #{map_to_amount_feature_major.1} parent=1 // pred_check_branch
      %58 = sbr.rel (0) target = $region21
    $region20: #{map_to_amount_feature_major.1} parent=1 // pred_region
      %59 = dma.done [#allocation4], 16
    $region21: #{map_to_amount_feature_major.1} parent=1 // pred_fallthru
      _
    %60 = vsyncpa [#allocation4], 1

</llo_original>
